<compile_context>
chip_gen: v6e
topology: v6e:2x2x1
jax: 0.10.0
libtpu: 0.0.40
codegen_flags: <defaults>
</compile_context>

<pallas_src>
import functools

import jax
import jax.numpy as jnp
from jax.experimental import pallas as pl
from jax.experimental.pallas import tpu as pltpu


def _rmsnorm_kernel(x_ref, w_ref, o_ref, *, eps):
    # x_ref: (TM, H) tile of tokens; w_ref: (1, H) weight resident in VMEM.
    #
    # NOTE on ragged last blocks: rows beyond the valid region of a partial
    # block hold whatever bytes are already in the VMEM buffer.  Every row's
    # reduction is independent (mean over H only), so garbage rows can at
    # worst produce inf/NaN that is discarded on writeback.  Do NOT add any
    # reduction over the token (sublane) axis here.
    xf = x_ref[...].astype(jnp.float32)
    variance = jnp.mean(xf * xf, axis=-1, keepdims=True)      # VPU + XLU
    normed = xf * jax.lax.rsqrt(variance + eps)                # rsqrt -> EUP
    # PyTorch parity: cast the normalized activations back to the *input*
    # dtype before the weight multiply (no-op for f32 inputs).
    normed = normed.astype(x_ref.dtype)
    o_ref[...] = (w_ref[...] * normed).astype(o_ref.dtype)


def _tpu_params():
    """(vmem_capacity_bytes, num_tensorcores) with safe fallbacks."""
    vmem_capacity = 64 << 20   # conservative default = v7x per-TC VMEM
    num_cores = 1
    try:
        info = pltpu.get_tpu_info()
        cap = getattr(info, "vmem_capacity_bytes", None)
        if cap:
            vmem_capacity = int(cap)
        for name in ("num_cores", "core_count", "tensorcore_count",
                     "num_tensorcores"):
            val = getattr(info, name, None)
            if val:
                num_cores = int(val)
                break
        else:
            # Heuristic: the 64 MiB-VMEM part (v7x) has 2 TCs per chip;
            # 128 MiB parts (v5e/v6e) have 1.
            num_cores = 2 if vmem_capacity <= (64 << 20) else 1
    except Exception:  # no TPU info available -> conservative defaults
        pass
    return vmem_capacity, num_cores


def _row_align(dtype):
    # Sublane alignment per packed dtype: f32 -> 8, bf16 -> 16, int8/fp8 -> 32.
    return {1: 32, 2: 16, 4: 8}.get(jnp.dtype(dtype).itemsize, 8)


def _pick_block_tokens(T, H, in_bytes, out_bytes, *, row_align,
                       vmem_capacity, num_cores):
    """Largest byte-budgeted token tile (generation-aware)."""
    # Budget for the double-buffered in+out tiles:
    #   128 MiB parts (v5e/v6e): ~56 MiB; 64 MiB part (v7x): ~26 MiB.
    budget = (56 << 20) if vmem_capacity >= (96 << 20) else (26 << 20)
    per_row = 2 * H * (in_bytes + out_bytes)          # 2x = double buffering
    cap_rows = max(row_align, (budget // per_row) // row_align * row_align)

    if T <= cap_rows:
        # Whole problem fits one step.  Only split when there are >=2
        # TensorCores to shard the "parallel" grid axis over (v7x); a
        # single-TC chip would just pay an extra grid-step overhead.
        if num_cores >= 2 and T > num_cores * row_align:
            per_core = pl.cdiv(pl.cdiv(T, num_cores), row_align) * row_align
            return int(max(row_align, per_core))
        # Full-dim block: no sublane padding, exactly one grid step.
        return int(T)

    # Large problem: biggest tile under the byte budget.  On multi-TC chips
    # nudge the tile so the step count is a multiple of the core count.
    bt = int(cap_rows)
    if num_cores >= 2:
        steps = pl.cdiv(T, bt)
        if steps % num_cores:
            steps = pl.cdiv(steps, num_cores) * num_cores
            bt = pl.cdiv(pl.cdiv(T, steps), row_align) * row_align
            bt = int(max(row_align, min(bt, cap_rows)))
    return bt


def llama_rmsnorm(hidden_states, weight, eps=1e-6, *,
                  cast_weight_to_input_dtype=False,
                  block_tokens=None, vmem_limit_bytes=None):
    """hidden_states: (..., H); weight: (H,).

    Default semantics match the PyTorch module exactly: activations are
    normalized in f32, cast back to the input dtype, then multiplied by the
    (f32) weight -> output dtype is the PyTorch promotion.  Set
    `cast_weight_to_input_dtype=True` for the HF-Llama-in-bf16 behaviour
    (bf16 weight -> bf16 output, half the output HBM writeback).
    """
    orig_shape = hidden_states.shape
    H = orig_shape[-1]
    x2d = hidden_states.reshape(-1, H)
    T = x2d.shape[0]

    if cast_weight_to_input_dtype:
        weight = weight.astype(hidden_states.dtype)
    out_dtype = jnp.promote_types(weight.dtype, hidden_states.dtype)

    in_bytes = jnp.dtype(hidden_states.dtype).itemsize
    out_bytes = jnp.dtype(out_dtype).itemsize
    w_bytes = jnp.dtype(weight.dtype).itemsize

    vmem_capacity, num_cores = _tpu_params()
    row_align = max(_row_align(hidden_states.dtype), _row_align(out_dtype))

    if block_tokens is None:
        block_tokens = _pick_block_tokens(
            T, H, in_bytes, out_bytes, row_align=row_align,
            vmem_capacity=vmem_capacity, num_cores=num_cores)

    grid = (pl.cdiv(T, block_tokens),)   # ragged last block handled by Pallas

    if vmem_limit_bytes is None:
        # Double-buffered in/out tiles + resident weight + modest headroom,
        # sized from the actual tile (no hard floor -> safe on v7x's 64 MiB),
        # but always above the small scoped default (essential on v5e).
        tile_bytes = 2 * block_tokens * H * (in_bytes + out_bytes) + H * w_bytes
        vmem_limit_bytes = min(vmem_capacity - (4 << 20), tile_bytes + (8 << 20))
        vmem_limit_bytes = max(vmem_limit_bytes, 16 << 20)

    w2d = weight.reshape(1, H)
    kernel = functools.partial(_rmsnorm_kernel, eps=eps)

    out = pl.pallas_call(
        kernel,
        out_shape=jax.ShapeDtypeStruct((T, H), out_dtype),
        grid_spec=pltpu.PrefetchScalarGridSpec(
            num_scalar_prefetch=0,
            grid=grid,
            in_specs=[
                pl.BlockSpec((block_tokens, H), lambda i: (i, 0)),
                # Whole weight resident in VMEM for the entire call: no
                # per-step DMA, no extra double-buffer pair.
                pl.BlockSpec(memory_space=pltpu.MemorySpace.VMEM),
            ],
            out_specs=pl.BlockSpec((block_tokens, H), lambda i: (i, 0)),
        ),
        compiler_params=pltpu.CompilerParams(
            dimension_semantics=("parallel",),
            vmem_limit_bytes=int(vmem_limit_bytes),
        ),
    )(x2d, w2d)
    return out.reshape(orig_shape)


def _reference(hidden_states, weight, eps=1e-6):
    input_dtype = hidden_states.dtype
    hs = hidden_states.astype(jnp.float32)
    variance = jnp.mean(hs * hs, axis=-1, keepdims=True)
    hs = hs * jax.lax.rsqrt(variance + eps)
    return weight * hs.astype(input_dtype)


if __name__ == "__main__":
    key = jax.random.PRNGKey(0)
    # seq=9 -> 18 tokens: not a multiple of 8, exercises the full-dim /
    # ragged block handling.
    batch, seq, hidden = 2, 9, 128
    x = jax.random.normal(key, (batch, seq, hidden), dtype=jnp.float32)
    # Deterministic parameter init (nn.Parameter(torch.ones(hidden_size))).
    weight = jnp.ones((hidden,), dtype=jnp.float32)

    out = jax.block_until_ready(llama_rmsnorm(x, weight, eps=1e-6))
    ref = _reference(x, weight, eps=1e-6)
    assert out.shape == x.shape
    assert out.dtype == ref.dtype
    assert jnp.allclose(out, ref, atol=1e-5, rtol=1e-5)

    # bf16 activations, strict PyTorch promotion (f32 weight -> f32 output).
    x_bf16 = x.astype(jnp.bfloat16)
    out_bf16 = jax.block_until_ready(llama_rmsnorm(x_bf16, weight, eps=1e-6))
    ref_bf16 = _reference(x_bf16, weight, eps=1e-6)
    assert out_bf16.dtype == ref_bf16.dtype
    assert jnp.allclose(out_bf16.astype(jnp.float32),
                        ref_bf16.astype(jnp.float32), atol=2e-2, rtol=2e-2)

    # Optional fast path: bf16 weight/output (halves output HBM writeback).
    out_fast = jax.block_until_ready(
        llama_rmsnorm(x_bf16, weight, eps=1e-6, cast_weight_to_input_dtype=True))
    assert out_fast.dtype == jnp.bfloat16
    assert jnp.allclose(out_fast.astype(jnp.float32),
                        ref_bf16.astype(jnp.float32), atol=2e-2, rtol=2e-2)

    print("KERNEL_OK")
</pallas_src>

<mosaic_0001>
module attributes {stable_mosaic.version = 11 : i64} {
  func.func @_rmsnorm_kernel(%arg0: i32, %arg1: memref<18x128xf32, #tpu.memory_space<vmem>>, %arg2: memref<1x128xf32, #tpu.memory_space<vmem>>, %arg3: memref<18x128xf32, #tpu.memory_space<vmem>>) attributes {dimension_semantics = [#tpu.dimension_semantics<parallel>], iteration_bounds = array<i64: 1>, scalar_prefetch = 0 : i64, scratch_operands = 0 : i64, tpu.core_type = #tpu.core_type<tc>, window_params = [{transform_indices = @transform_0, window_bounds = array<i64: 18, 128>}, {pipeline_mode = #tpu.pipeline_mode<synchronous>, transform_indices = @transform_1, window_bounds = array<i64: 1, 128>}, {transform_indices = @transform_2, window_bounds = array<i64: 18, 128>}]} {
    %c0 = arith.constant 0 : index
    %c0_0 = arith.constant 0 : index
    %0 = vector.load %arg1[%c0, %c0_0] : memref<18x128xf32, #tpu.memory_space<vmem>>, vector<18x128xf32>
    %1 = arith.mulf %0, %0 : vector<18x128xf32>
    %cst = arith.constant dense<0.000000e+00> : vector<18xf32>
    %2 = vector.multi_reduction <add>, %1, %cst [1] : vector<18x128xf32> to vector<18xf32>
    %3 = vector.shape_cast %2 : vector<18xf32> to vector<18x1xf32>
    %cst_1 = arith.constant 1.280000e+02 : f32
    %4 = vector.broadcast %cst_1 : f32 to vector<18x1xf32>
    %5 = arith.divf %3, %4 : vector<18x1xf32>
    %cst_2 = arith.constant 9.99999997E-7 : f32
    %6 = vector.broadcast %cst_2 : f32 to vector<18x1xf32>
    %7 = arith.addf %5, %6 : vector<18x1xf32>
    %8 = math.rsqrt %7 : vector<18x1xf32>
    %9 = vector.broadcast %8 : vector<18x1xf32> to vector<18x128xf32>
    %10 = arith.mulf %0, %9 : vector<18x128xf32>
    %c0_3 = arith.constant 0 : index
    %c0_4 = arith.constant 0 : index
    %11 = vector.load %arg2[%c0_3, %c0_4] : memref<1x128xf32, #tpu.memory_space<vmem>>, vector<1x128xf32>
    %12 = vector.broadcast %11 : vector<1x128xf32> to vector<18x128xf32>
    %13 = arith.mulf %12, %10 : vector<18x128xf32>
    %c0_5 = arith.constant 0 : index
    %c0_6 = arith.constant 0 : index
    %14 = vector.load %arg3[%c0_5, %c0_6] : memref<18x128xf32, #tpu.memory_space<vmem>>, vector<18x128xf32>
    tpu.vector_store %arg3[%c0_5, %c0_6], %13 {strides = array<i32>} : memref<18x128xf32, #tpu.memory_space<vmem>>, vector<18x128xf32>,
    return
  }
  func.func @transform_0(%arg0: i32) -> (i32, i32) {
    %c0_i32 = arith.constant 0 : i32
    %c0_i32_0 = arith.constant 0 : i32
    return %arg0, %c0_i32 : i32, i32
  }
  func.func @transform_1(%arg0: i32) -> (i32, i32) {
    %c0_i32 = arith.constant 0 : i32
    %c0_i32_0 = arith.constant 0 : i32
    %c0_i32_1 = arith.constant 0 : i32
    return %c0_i32, %c0_i32_0 : i32, i32
  }
  func.func @transform_2(%arg0: i32) -> (i32, i32) {
    %c0_i32 = arith.constant 0 : i32
    %c0_i32_0 = arith.constant 0 : i32
    return %arg0, %c0_i32 : i32, i32
  }
}

</mosaic_0001>

<llo_original>
// kernel: tpu_custom_call.1
$region0: #{tpu_custom_call.1}
  #allocation0 [shape = 'u32[]', space=smem, size = 0x4, offset = 0x4, fixed_abs, tag = 'smem constant byte address 0x4 - core index']
  #allocation1 [shape = 'u32[144,128]{1,0:T(1,128)}', space=vmem, size = 0x12000, scoped, tag = 'internal scratch']
  %s0 = inlined_call_operand.hbm [shape: f32[18,128], index: 0, kind: input, shape index: {}]
  %s1 = inlined_call_operand.vmem [shape: f32[1,128], index: 1, kind: input, shape index: {}]
  %s2 = inlined_call_operand.hbm [shape: f32[18,128], index: 2, kind: output, shape index: {}]
  %s3 = sld [smem:[#allocation0]]
  $region22: #{tpu_custom_call.1} parent=0
    _
  %s5 = ssub.s32 1, %s3
  %s6 = scalar_select 0, %s5, %s3
  $region1: #{tpu_custom_call.1} parent=0
    #allocation2 [shape = 'u8[12288]{0}', space=vmem, size = 0x3000, scoped, tag = 'input window, operand 0, single buffered']
    #allocation3 [shape = 's32[1]{0}', space=sflag, size = 0x4, scoped, tag = 'scoped memory for tpu_custom_call.1']
    #allocation4 [shape = 's32[1]{0}', space=sflag, size = 0x4, scoped, tag = 'scoped memory for tpu_custom_call.1']
    #allocation5 [shape = 'u8[12288]{0}', space=vmem, size = 0x3000, scoped, tag = 'output window, operand 0, single buffered']
    %7 = vsyncpa [#allocation3], 0
    %8 = vsyncpa [#allocation4], 0
    // Predicated region
    $region2: #{tpu_custom_call.1} parent=1 // pred_check
      _
    $region3: #{tpu_custom_call.1} parent=1 // pred_check_branch
      %10 = sbr.rel (0) target = $region5
    $region4: #{tpu_custom_call.1} parent=1 // pred_region
      %s12 = ssub.s32 384, 384
      %13 = vsyncadd [#allocation3], %s12
      %s14 = sshll.u32 [#allocation2], 4
      %s15 = int_to_ptr.vmem [resolvable:$true] %s14
      %20 = dma.hbm_to_vmem [thread:$0]  %s0, 384, %s15, [#allocation3], 128, 128, 8
    $region5: #{tpu_custom_call.1} parent=1 // pred_fallthru
      _
    // Predicated region
    $region6: #{tpu_custom_call.1} parent=1 // pred_check
      _
    $region7: #{tpu_custom_call.1} parent=1 // pred_check_branch
      %22 = sbr.rel (0) target = $region9
    $region8: #{tpu_custom_call.1} parent=1 // pred_region
      _
    $region9: #{tpu_custom_call.1} parent=1 // pred_fallthru
      _
    // Predicated region
    $region10: #{tpu_custom_call.1} parent=1 // pred_check
      _
    $region11: #{tpu_custom_call.1} parent=1 // pred_check_branch
      %24 = sbr.rel (0) target = $region13
    $region12: #{tpu_custom_call.1} parent=1 // pred_region
      %25 = dma.done [#allocation3], 384
    $region13: #{tpu_custom_call.1} parent=1 // pred_fallthru
      _
    %v26 = vld [vmem:[#allocation2] sm:$0xff]
    %v27 = vld [vmem:[#allocation2 + $0x8] sm:$0xff]
    %v28 = vld [vmem:[#allocation2 + $0x10] sm:$0x3]
    %v29 = vmul.f32 %v26, %v26
    %v30 = vmul.f32 %v27, %v27
    %v31 = vmul.f32 %v28, %v28
    %32 = vadd.xlane.f32.xlu0 %v29
    %v33 = vpop.xlane.xlu0 %32
    %34 = vadd.xlane.f32.xlu0 %v30
    %v35 = vpop.xlane.xlu0 %34
    %vm36 = vcmask 1041408
    %v37 = vsel %vm36, %v31, 0.0
    %38 = vadd.xlane.f32.xlu0 %v37
    %v39 = vpop.xlane.xlu0 %38
    %v40 = vrcp.pop 128.0
    %v41 = vmul.f32 %v33, %v40
    %v42 = vmul.f32 %v35, %v40
    %v43 = vmul.f32 %v39, %v40
    %v44 = vadd.f32 %v41, 1e-06
    %v45 = vadd.f32 %v42, 1e-06
    %v46 = vadd.f32 %v43, 1e-06
    %v47 = vrsqrt.pop %v44
    %v48 = vrsqrt.pop %v45
    %v49 = vrsqrt.pop %v46
    %v50 = vmul.f32 %v26, %v47
    %v51 = vmul.f32 %v27, %v48
    %v52 = vmul.f32 %v28, %v49
    %v53 = vld [vmem:[%s1] sm:$0x1]
    %v55 = vlaneseq
    %v56 = vshrl.u32 %v55, 7
    %v57 = vsub.s32 0, %v56
    %v58 = vrot.slane %v53, %v57
    %v60 = vmul.f32 %v58, %v50
    %v61 = vmul.f32 %v58, %v51
    %v62 = vmul.f32 %v58, %v52
    %63 = vst [vmem:[#allocation5] sm:$0xff] %v60
    %64 = vst [vmem:[#allocation5 + $0x8] sm:$0xff] %v61
    %65 = vst [vmem:[#allocation5 + $0x10] sm:$0x3] %v62
    // Predicated region
    $region14: #{tpu_custom_call.1} parent=1 // pred_check
      _
    $region15: #{tpu_custom_call.1} parent=1 // pred_check_branch
      %67 = sbr.rel (0) target = $region17
    $region16: #{tpu_custom_call.1} parent=1 // pred_region
      %s69 = ssub.s32 384, 384
      %70 = vsyncadd [#allocation4], %s69
      %s71 = sshll.u32 [#allocation5], 4
      %s72 = int_to_ptr.vmem [resolvable:$true] %s71
      %77 = dma.vmem_to_hbm [thread:$0]  %s72, 384, %s2, [#allocation4], 128, 128, 8
    $region17: #{tpu_custom_call.1} parent=1 // pred_fallthru
      _
    // Predicated region
    $region18: #{tpu_custom_call.1} parent=1 // pred_check
      _
    $region19: #{tpu_custom_call.1} parent=1 // pred_check_branch
      %79 = sbr.rel (0) target = $region21
    $region20: #{tpu_custom_call.1} parent=1 // pred_region
      %80 = dma.done [#allocation4], 384
    $region21: #{tpu_custom_call.1} parent=1 // pred_fallthru
      _
    %81 = vsyncpa [#allocation3], 1
    %82 = vsyncpa [#allocation4], 1

</llo_original>
